<compile_context>
chip_gen: v7x
topology: tpu7x:2x2x1
jax: 0.10.0
libtpu: 0.0.40
codegen_flags: <defaults>
</compile_context>

<pallas_src>
import functools

import jax
import jax.numpy as jnp
from jax import lax
from jax.experimental import pallas as pl
from jax.experimental.pallas import tpu as pltpu


def _round_up(n: int, m: int) -> int:
    return ((n + m - 1) // m) * m


def _vmem_capacity_bytes() -> int:
    """Per-core VMEM capacity; conservative (v7x) fallback if unqueryable."""
    try:
        info = pltpu.get_tpu_info()
        cap = getattr(info, "vmem_capacity_bytes", None)
        if cap:
            return int(cap)
    except Exception:
        pass
    try:
        kind = jax.devices()[0].device_kind.lower()
        if "v5" in kind or "v6" in kind:
            return 128 * 1024 * 1024
    except Exception:
        pass
    return 64 * 1024 * 1024


def _layernorm_linear_kernel(x_ref, g_ref, bt_ref, w_ref, b_ref, o_ref,
                             *, eps: float, d: int):
    """o = (LayerNorm(x) * gamma + beta) @ W[:, col_tile] + b[col_tile]."""
    x = x_ref[...].astype(jnp.float32)                       # (tm, D)

    # One-pass LN statistics (biased variance, matching torch.nn.LayerNorm).
    inv_d = 1.0 / d
    s = jnp.sum(x, axis=-1, keepdims=True)
    sq = jnp.sum(x * x, axis=-1, keepdims=True)
    mean = s * inv_d
    var = jnp.maximum(sq * inv_d - mean * mean, 0.0)
    inv = lax.rsqrt(var + eps)                               # EUP slot
    y = (x - mean) * inv * g_ref[...] + bt_ref[...]          # gamma/beta (1, D)

    # MXU matmul in W's dtype (bf16), f32 accumulation; bias added in f32.
    out = jnp.dot(y.astype(w_ref.dtype), w_ref[...],
                  preferred_element_type=jnp.float32)
    o_ref[...] = (out + b_ref[...]).astype(o_ref.dtype)


def layernorm_linear(x, gamma, beta, w, b, *, eps: float = 1e-5,
                     mxu_dtype=jnp.bfloat16):
    """Apply LayerNormalize(dim, fn=Linear(dim, dim)): (B, S, D) -> (B, S, D)."""
    B, S, D = x.shape
    M = B * S

    # No HBM padding of the activation: block last dim equals full D.
    x2 = x.reshape(M, D)
    g2 = gamma.reshape(1, D).astype(jnp.float32)
    bt2 = beta.reshape(1, D).astype(jnp.float32)
    w2 = w.astype(mxu_dtype)                      # full-rate MXU path
    b2 = b.reshape(1, D).astype(jnp.float32)      # bias stays exact in f32

    x_item = x2.dtype.itemsize
    w_item = w2.dtype.itemsize

    # Generation-aware VMEM knobs.
    vmem_cap = _vmem_capacity_bytes()
    if vmem_cap >= 100 * 1024 * 1024:             # v5e / v6e: 128 MiB
        tile_budget = 24 * 1024 * 1024
        vmem_limit_cap = 96 * 1024 * 1024
    else:                                         # v7x: 64 MiB per TC
        tile_budget = 8 * 1024 * 1024
        vmem_limit_cap = 48 * 1024 * 1024

    # Output-column tiling: keep W fully VMEM-resident when it fits; otherwise
    # stream lane-dense (multiple-of-128) column slabs of W.
    w_resident_budget = vmem_limit_cap // 3
    if D <= 128 or D * D * w_item <= w_resident_budget:
        tn = D
    else:
        tn = (w_resident_budget // (2 * D * w_item)) // 128 * 128
        tn = int(min(max(tn, 128), D))
    n_col = pl.cdiv(D, tn)
    w_resident = (n_col == 1)

    # Row tiles: double-buffered x/out tiles + in-kernel f32 temporaries.
    per_row_bytes = 2 * D * x_item + 2 * tn * x_item + 2 * D * 4
    tm = tile_budget // max(per_row_bytes, 1)
    tm = max(8, min(2048, (tm // 8) * 8))
    if M > 8:
        # >= 2 row tiles so the "parallel" axis can split across v7x's two TCs.
        tm = min(tm, _round_up(pl.cdiv(M, 2), 8))
    if tm >= M:
        tm = M
    n_row = pl.cdiv(M, tm)

    w_bufs = 1 if w_resident else 2
    est_vmem = (2 * tm * D * x_item + 2 * tm * tn * x_item
                + w_bufs * D * tn * w_item
                + 2 * tm * D * 4 + (3 * D + 2 * tn) * 4)
    vmem_limit = int(min(max(2 * est_vmem, 16 * 1024 * 1024), vmem_limit_cap))

    kernel = functools.partial(_layernorm_linear_kernel, eps=eps, d=D)

    cost = pl.CostEstimate(
        flops=2 * M * D * D + 8 * M * D,
        transcendentals=M,
        bytes_accessed=(2 * M * D * x_item                                  # x + out
                        + (1 if w_resident else n_row) * D * D * w_item     # W traffic
                        + 3 * D * 4))                                       # params

    def _call(single_buffer_resident: bool):
        def spec(shape, index_map, resident=False):
            if resident and single_buffer_resident:
                try:
                    return pl.BlockSpec(shape, index_map,
                                        pipeline_mode=pl.Buffered(1))
                except Exception:
                    return pl.BlockSpec(shape, index_map)
            return pl.BlockSpec(shape, index_map)

        return pl.pallas_call(
            kernel,
            out_shape=jax.ShapeDtypeStruct((M, D), x.dtype),
            grid_spec=pltpu.PrefetchScalarGridSpec(
                num_scalar_prefetch=0,
                grid=(n_row, n_col),
                in_specs=[
                    spec((tm, D), lambda i, j: (i, 0)),                       # x rows
                    spec((1, D), lambda i, j: (0, 0), resident=True),         # gamma
                    spec((1, D), lambda i, j: (0, 0), resident=True),         # beta
                    spec((D, tn), lambda i, j: (0, j), resident=w_resident),  # W
                    spec((1, tn), lambda i, j: (0, j), resident=w_resident),  # b
                ],
                out_specs=spec((tm, tn), lambda i, j: (i, j)),
            ),
            compiler_params=pltpu.CompilerParams(
                dimension_semantics=("parallel", "parallel"),
                vmem_limit_bytes=vmem_limit),
            cost_estimate=cost,
        )(x2, g2, bt2, w2, b2)

    try:
        out2 = _call(True)
    except Exception:
        # pl.Buffered(1) not supported by this build -> default double buffering.
        out2 = _call(False)

    return out2.reshape(B, S, D)


if __name__ == "__main__":
    key = jax.random.PRNGKey(0)
    kx, kg, kbt, kw, kb = jax.random.split(key, 5)

    B, S, D = 2, 8, 32
    x = jax.random.normal(kx, (B, S, D), dtype=jnp.float32)
    # nn.LayerNorm(dim) affine parameters
    gamma = 1.0 + 0.1 * jax.random.normal(kg, (D,), dtype=jnp.float32)
    beta = 0.05 * jax.random.normal(kbt, (D,), dtype=jnp.float32)
    # fn = Linear(D, D)
    w = 0.02 * jax.random.normal(kw, (D, D), dtype=jnp.float32)
    b = 0.01 * jax.random.normal(kb, (D,), dtype=jnp.float32)

    out = layernorm_linear(x, gamma, beta, w, b)
    jax.block_until_ready(out)

    # Reference: fn(LayerNorm(x)).
    mean = x.mean(-1, keepdims=True)
    var = ((x - mean) ** 2).mean(-1, keepdims=True)
    xn = (x - mean) / jnp.sqrt(var + 1e-5)
    y = xn * gamma + beta
    # bf16-matmul reference (matches the kernel's MXU path, f32 accumulation).
    ref_bf16 = (jnp.dot(y.reshape(-1, D).astype(jnp.bfloat16),
                        w.astype(jnp.bfloat16),
                        preferred_element_type=jnp.float32).reshape(B, S, D) + b)
    # full-f32 reference (loose check for the bf16 weight rounding).
    ref_f32 = jnp.einsum("bsd,de->bse", y, w) + b

    assert out.shape == (B, S, D)
    assert jnp.allclose(out, ref_bf16, atol=5e-3, rtol=5e-3), \
        "mismatch vs bf16-matmul reference"
    assert jnp.allclose(out, ref_f32, atol=3e-2, rtol=3e-2), \
        "mismatch vs f32 reference"

    print("KERNEL_OK")
</pallas_src>

<mosaic_0001>
module attributes {stable_mosaic.version = 11 : i64} {
  func.func @_layernorm_linear_kernel(%arg0: i32, %arg1: i32, %arg2: memref<8x32xf32, #tpu.memory_space<vmem>>, %arg3: memref<1x32xf32, #tpu.memory_space<vmem>>, %arg4: memref<1x32xf32, #tpu.memory_space<vmem>>, %arg5: memref<32x32xbf16, #tpu.memory_space<vmem>>, %arg6: memref<1x32xf32, #tpu.memory_space<vmem>>, %arg7: memref<8x32xf32, #tpu.memory_space<vmem>>) attributes {dimension_semantics = [#tpu.dimension_semantics<parallel>, #tpu.dimension_semantics<parallel>], iteration_bounds = array<i64: 2, 1>, scalar_prefetch = 0 : i64, scratch_operands = 0 : i64, tpu.core_type = #tpu.core_type<tc>, window_params = [{transform_indices = @transform_0, window_bounds = array<i64: 8, 32>}, {pipeline_mode = #tpu.pipeline_mode<synchronous>, transform_indices = @transform_1, window_bounds = array<i64: 1, 32>}, {pipeline_mode = #tpu.pipeline_mode<synchronous>, transform_indices = @transform_2, window_bounds = array<i64: 1, 32>}, {pipeline_mode = #tpu.pipeline_mode<synchronous>, transform_indices = @transform_3, window_bounds = array<i64: 32, 32>}, {pipeline_mode = #tpu.pipeline_mode<synchronous>, transform_indices = @transform_4, window_bounds = array<i64: 1, 32>}, {transform_indices = @transform_5, window_bounds = array<i64: 8, 32>}]} {
    %c0 = arith.constant 0 : index
    %c0_0 = arith.constant 0 : index
    %0 = vector.load %arg2[%c0, %c0_0] : memref<8x32xf32, #tpu.memory_space<vmem>>, vector<8x32xf32>
    %cst = arith.constant dense<0.000000e+00> : vector<8xf32>
    %1 = vector.multi_reduction <add>, %0, %cst [1] : vector<8x32xf32> to vector<8xf32>
    %2 = vector.shape_cast %1 : vector<8xf32> to vector<8x1xf32>
    %3 = arith.mulf %0, %0 : vector<8x32xf32>
    %cst_1 = arith.constant dense<0.000000e+00> : vector<8xf32>
    %4 = vector.multi_reduction <add>, %3, %cst_1 [1] : vector<8x32xf32> to vector<8xf32>
    %5 = vector.shape_cast %4 : vector<8xf32> to vector<8x1xf32>
    %cst_2 = arith.constant 3.125000e-02 : f32
    %6 = vector.broadcast %cst_2 : f32 to vector<8x1xf32>
    %7 = arith.mulf %2, %6 : vector<8x1xf32>
    %cst_3 = arith.constant 3.125000e-02 : f32
    %8 = vector.broadcast %cst_3 : f32 to vector<8x1xf32>
    %9 = arith.mulf %5, %8 : vector<8x1xf32>
    %10 = arith.mulf %7, %7 : vector<8x1xf32>
    %11 = arith.subf %9, %10 : vector<8x1xf32>
    %cst_4 = arith.constant 0.000000e+00 : f32
    %12 = vector.broadcast %cst_4 : f32 to vector<8x1xf32>
    %13 = arith.maximumf %11, %12 : vector<8x1xf32>
    %cst_5 = arith.constant 9.99999974E-6 : f32
    %14 = vector.broadcast %cst_5 : f32 to vector<8x1xf32>
    %15 = arith.addf %13, %14 : vector<8x1xf32>
    %16 = math.rsqrt %15 : vector<8x1xf32>
    %17 = vector.broadcast %7 : vector<8x1xf32> to vector<8x32xf32>
    %18 = arith.subf %0, %17 : vector<8x32xf32>
    %19 = vector.broadcast %16 : vector<8x1xf32> to vector<8x32xf32>
    %20 = arith.mulf %18, %19 : vector<8x32xf32>
    %c0_6 = arith.constant 0 : index
    %c0_7 = arith.constant 0 : index
    %21 = vector.load %arg3[%c0_6, %c0_7] : memref<1x32xf32, #tpu.memory_space<vmem>>, vector<1x32xf32>
    %22 = vector.broadcast %21 : vector<1x32xf32> to vector<8x32xf32>
    %23 = arith.mulf %20, %22 : vector<8x32xf32>
    %c0_8 = arith.constant 0 : index
    %c0_9 = arith.constant 0 : index
    %24 = vector.load %arg4[%c0_8, %c0_9] : memref<1x32xf32, #tpu.memory_space<vmem>>, vector<1x32xf32>
    %25 = vector.broadcast %24 : vector<1x32xf32> to vector<8x32xf32>
    %26 = arith.addf %23, %25 : vector<8x32xf32>
    %27 = arith.truncf %26 : vector<8x32xf32> to vector<8x32xbf16>
    %c0_10 = arith.constant 0 : index
    %c0_11 = arith.constant 0 : index
    %28 = vector.load %arg5[%c0_10, %c0_11] : memref<32x32xbf16, #tpu.memory_space<vmem>>, vector<32x32xbf16>
    %cst_12 = arith.constant dense<0.000000e+00> : vector<8x32xf32>
    %29 = tpu.matmul %27, %28, %cst_12 {dimension_numbers = #tpu.dot_dimension_numbers<[1], [0], [0], [1], [0, 0, 1, 1], [], []>} : vector<8x32xbf16>, vector<32x32xbf16>, vector<8x32xf32> -> vector<8x32xf32>
    %c0_13 = arith.constant 0 : index
    %c0_14 = arith.constant 0 : index
    %30 = vector.load %arg6[%c0_13, %c0_14] : memref<1x32xf32, #tpu.memory_space<vmem>>, vector<1x32xf32>
    %31 = vector.broadcast %30 : vector<1x32xf32> to vector<8x32xf32>
    %32 = arith.addf %29, %31 : vector<8x32xf32>
    %c0_15 = arith.constant 0 : index
    %c0_16 = arith.constant 0 : index
    %33 = vector.load %arg7[%c0_15, %c0_16] : memref<8x32xf32, #tpu.memory_space<vmem>>, vector<8x32xf32>
    tpu.vector_store %arg7[%c0_15, %c0_16], %32 {strides = array<i32>} : memref<8x32xf32, #tpu.memory_space<vmem>>, vector<8x32xf32>,
    return
  }
  func.func @transform_0(%arg0: i32, %arg1: i32) -> (i32, i32) {
    %c0_i32 = arith.constant 0 : i32
    %c0_i32_0 = arith.constant 0 : i32
    return %arg0, %c0_i32 : i32, i32
  }
  func.func @transform_1(%arg0: i32, %arg1: i32) -> (i32, i32) {
    %c0_i32 = arith.constant 0 : i32
    %c0_i32_0 = arith.constant 0 : i32
    %c0_i32_1 = arith.constant 0 : i32
    return %c0_i32, %c0_i32_0 : i32, i32
  }
  func.func @transform_2(%arg0: i32, %arg1: i32) -> (i32, i32) {
    %c0_i32 = arith.constant 0 : i32
    %c0_i32_0 = arith.constant 0 : i32
    %c0_i32_1 = arith.constant 0 : i32
    return %c0_i32, %c0_i32_0 : i32, i32
  }
  func.func @transform_3(%arg0: i32, %arg1: i32) -> (i32, i32) {
    %c0_i32 = arith.constant 0 : i32
    %c0_i32_0 = arith.constant 0 : i32
    return %c0_i32, %arg1 : i32, i32
  }
  func.func @transform_4(%arg0: i32, %arg1: i32) -> (i32, i32) {
    %c0_i32 = arith.constant 0 : i32
    %c0_i32_0 = arith.constant 0 : i32
    return %c0_i32, %arg1 : i32, i32
  }
  func.func @transform_5(%arg0: i32, %arg1: i32) -> (i32, i32) {
    %c0_i32 = arith.constant 0 : i32
    return %arg0, %arg1 : i32, i32
  }
}

module attributes {stable_mosaic.version = 11 : i64} {
  func.func @_layernorm_linear_kernel(%arg0: i32, %arg1: i32, %arg2: memref<8x32xf32, #tpu.memory_space<vmem>>, %arg3: memref<1x32xf32, #tpu.memory_space<vmem>>, %arg4: memref<1x32xf32, #tpu.memory_space<vmem>>, %arg5: memref<32x32xbf16, #tpu.memory_space<vmem>>, %arg6: memref<1x32xf32, #tpu.memory_space<vmem>>, %arg7: memref<8x32xf32, #tpu.memory_space<vmem>>) attributes {dimension_semantics = [#tpu.dimension_semantics<parallel>, #tpu.dimension_semantics<parallel>], iteration_bounds = array<i64: 2, 1>, scalar_prefetch = 0 : i64, scratch_operands = 0 : i64, tpu.core_type = #tpu.core_type<tc>, window_params = [{transform_indices = @transform_0, window_bounds = array<i64: 8, 32>}, {pipeline_mode = #tpu.pipeline_mode<synchronous>, transform_indices = @transform_1, window_bounds = array<i64: 1, 32>}, {pipeline_mode = #tpu.pipeline_mode<synchronous>, transform_indices = @transform_2, window_bounds = array<i64: 1, 32>}, {transform_indices = @transform_3, window_bounds = array<i64: 32, 32>}, {transform_indices = @transform_4, window_bounds = array<i64: 1, 32>}, {transform_indices = @transform_5, window_bounds = array<i64: 8, 32>}]} {
    %c0 = arith.constant 0 : index
    %c0_0 = arith.constant 0 : index
    %0 = vector.load %arg2[%c0, %c0_0] : memref<8x32xf32, #tpu.memory_space<vmem>>, vector<8x32xf32>
    %cst = arith.constant dense<0.000000e+00> : vector<8xf32>
    %1 = vector.multi_reduction <add>, %0, %cst [1] : vector<8x32xf32> to vector<8xf32>
    %2 = vector.shape_cast %1 : vector<8xf32> to vector<8x1xf32>
    %3 = arith.mulf %0, %0 : vector<8x32xf32>
    %cst_1 = arith.constant dense<0.000000e+00> : vector<8xf32>
    %4 = vector.multi_reduction <add>, %3, %cst_1 [1] : vector<8x32xf32> to vector<8xf32>
    %5 = vector.shape_cast %4 : vector<8xf32> to vector<8x1xf32>
    %cst_2 = arith.constant 3.125000e-02 : f32
    %6 = vector.broadcast %cst_2 : f32 to vector<8x1xf32>
    %7 = arith.mulf %2, %6 : vector<8x1xf32>
    %cst_3 = arith.constant 3.125000e-02 : f32
    %8 = vector.broadcast %cst_3 : f32 to vector<8x1xf32>
    %9 = arith.mulf %5, %8 : vector<8x1xf32>
    %10 = arith.mulf %7, %7 : vector<8x1xf32>
    %11 = arith.subf %9, %10 : vector<8x1xf32>
    %cst_4 = arith.constant 0.000000e+00 : f32
    %12 = vector.broadcast %cst_4 : f32 to vector<8x1xf32>
    %13 = arith.maximumf %11, %12 : vector<8x1xf32>
    %cst_5 = arith.constant 9.99999974E-6 : f32
    %14 = vector.broadcast %cst_5 : f32 to vector<8x1xf32>
    %15 = arith.addf %13, %14 : vector<8x1xf32>
    %16 = math.rsqrt %15 : vector<8x1xf32>
    %17 = vector.broadcast %7 : vector<8x1xf32> to vector<8x32xf32>
    %18 = arith.subf %0, %17 : vector<8x32xf32>
    %19 = vector.broadcast %16 : vector<8x1xf32> to vector<8x32xf32>
    %20 = arith.mulf %18, %19 : vector<8x32xf32>
    %c0_6 = arith.constant 0 : index
    %c0_7 = arith.constant 0 : index
    %21 = vector.load %arg3[%c0_6, %c0_7] : memref<1x32xf32, #tpu.memory_space<vmem>>, vector<1x32xf32>
    %22 = vector.broadcast %21 : vector<1x32xf32> to vector<8x32xf32>
    %23 = arith.mulf %20, %22 : vector<8x32xf32>
    %c0_8 = arith.constant 0 : index
    %c0_9 = arith.constant 0 : index
    %24 = vector.load %arg4[%c0_8, %c0_9] : memref<1x32xf32, #tpu.memory_space<vmem>>, vector<1x32xf32>
    %25 = vector.broadcast %24 : vector<1x32xf32> to vector<8x32xf32>
    %26 = arith.addf %23, %25 : vector<8x32xf32>
    %27 = arith.truncf %26 : vector<8x32xf32> to vector<8x32xbf16>
    %c0_10 = arith.constant 0 : index
    %c0_11 = arith.constant 0 : index
    %28 = vector.load %arg5[%c0_10, %c0_11] : memref<32x32xbf16, #tpu.memory_space<vmem>>, vector<32x32xbf16>
    %cst_12 = arith.constant dense<0.000000e+00> : vector<8x32xf32>
    %29 = tpu.matmul %27, %28, %cst_12 {dimension_numbers = #tpu.dot_dimension_numbers<[1], [0], [0], [1], [0, 0, 1, 1], [], []>} : vector<8x32xbf16>, vector<32x32xbf16>, vector<8x32xf32> -> vector<8x32xf32>
    %c0_13 = arith.constant 0 : index
    %c0_14 = arith.constant 0 : index
    %30 = vector.load %arg6[%c0_13, %c0_14] : memref<1x32xf32, #tpu.memory_space<vmem>>, vector<1x32xf32>
    %31 = vector.broadcast %30 : vector<1x32xf32> to vector<8x32xf32>
    %32 = arith.addf %29, %31 : vector<8x32xf32>
    %c0_15 = arith.constant 0 : index
    %c0_16 = arith.constant 0 : index
    %33 = vector.load %arg7[%c0_15, %c0_16] : memref<8x32xf32, #tpu.memory_space<vmem>>, vector<8x32xf32>
    tpu.vector_store %arg7[%c0_15, %c0_16], %32 {strides = array<i32>} : memref<8x32xf32, #tpu.memory_space<vmem>>, vector<8x32xf32>,
    return
  }
  func.func @transform_0(%arg0: i32, %arg1: i32) -> (i32, i32) {
    %c0_i32 = arith.constant 0 : i32
    %c0_i32_0 = arith.constant 0 : i32
    return %arg0, %c0_i32 : i32, i32
  }
  func.func @transform_1(%arg0: i32, %arg1: i32) -> (i32, i32) {
    %c0_i32 = arith.constant 0 : i32
    %c0_i32_0 = arith.constant 0 : i32
    %c0_i32_1 = arith.constant 0 : i32
    return %c0_i32, %c0_i32_0 : i32, i32
  }
  func.func @transform_2(%arg0: i32, %arg1: i32) -> (i32, i32) {
    %c0_i32 = arith.constant 0 : i32
    %c0_i32_0 = arith.constant 0 : i32
    %c0_i32_1 = arith.constant 0 : i32
    return %c0_i32, %c0_i32_0 : i32, i32
  }
  func.func @transform_3(%arg0: i32, %arg1: i32) -> (i32, i32) {
    %c0_i32 = arith.constant 0 : i32
    %c0_i32_0 = arith.constant 0 : i32
    return %c0_i32, %arg1 : i32, i32
  }
  func.func @transform_4(%arg0: i32, %arg1: i32) -> (i32, i32) {
    %c0_i32 = arith.constant 0 : i32
    %c0_i32_0 = arith.constant 0 : i32
    return %c0_i32, %arg1 : i32, i32
  }
  func.func @transform_5(%arg0: i32, %arg1: i32) -> (i32, i32) {
    %c0_i32 = arith.constant 0 : i32
    return %arg0, %arg1 : i32, i32
  }
}

</mosaic_0001>

<llo_original>
// kernel: tpu_custom_call.1
$region0: #{tpu_custom_call.1}
  #allocation0 [shape = 'u32[]', space=smem, size = 0x4, offset = 0x4, fixed_abs, tag = 'smem constant byte address 0x4 - core index']
  #allocation1 [shape = 'u32[144,128]{1,0:T(1,128)}', space=vmem, size = 0x12000, scoped, tag = 'internal scratch']
  %s0 = inlined_call_operand.hbm [shape: f32[16,32], index: 0, kind: input, shape index: {}]
  %s1 = inlined_call_operand.vmem [shape: f32[1,32], index: 1, kind: input, shape index: {}]
  %s2 = inlined_call_operand.vmem [shape: f32[1,32], index: 2, kind: input, shape index: {}]
  %s3 = inlined_call_operand.hbm [shape: bf16[32,32], index: 3, kind: input, shape index: {}]
  %s4 = inlined_call_operand.vmem [shape: f32[1,32], index: 4, kind: input, shape index: {}]
  %s5 = inlined_call_operand.hbm [shape: f32[16,32], index: 5, kind: output, shape index: {}]
  %s6 = sld [smem:[#allocation0]]
  $region61: #{tpu_custom_call.1} parent=0
    _
  %s8 = ssub.s32 1, %s6
  %s9 = scalar_select 0, %s8, %s6
  $region1: #{tpu_custom_call.1} parent=0
    #allocation2 [shape = 'u8[8192]{0}', space=vmem, size = 0x2000, scoped, tag = 'input window, operand 0']
    #allocation3 [shape = 's32[2]{0}', space=sflag, size = 0x8, scoped, tag = 'scoped memory for tpu_custom_call.1']
    #allocation4 [shape = 's32[2]{0}', space=sflag, size = 0x8, scoped, tag = 'scoped memory for tpu_custom_call.1']
    #allocation5 [shape = 'u8[8192]{0}', space=vmem, size = 0x2000, scoped, tag = 'input window, operand 3, single buffered']
    #allocation6 [shape = 's32[1]{0}', space=sflag, size = 0x4, scoped, tag = 'scoped memory for tpu_custom_call.1']
    #allocation7 [shape = 'u8[8192]{0}', space=vmem, size = 0x2000, scoped, tag = 'output window, operand 0']
    %10 = vsyncpa [#allocation3], 0
    %s11 = scalar_lea.sflag [#allocation3], 1
    %12 = vsyncpa %s11, 0
    %13 = vsyncpa [#allocation6], 0
    %14 = vsyncpa [#allocation4], 0
    %s15 = scalar_lea.sflag [#allocation4], 1
    %16 = vsyncpa %s15, 0
    loop: start=0, step=1, limit=4
    $region2: #{tpu_custom_call.1} parent=1 // loop_pre_header
      _
    $region3: #{tpu_custom_call.1} parent=1 // loop_header
      %s18 = sphi 0, %s22
      %p19 = scmp.ge.s32.totalorder %s18, 4
      %s25 = sphi 0, %s37
      %s26 = sphi 0, %s33
      %s27 = sphi 0, %s25
      %s28 = sphi 0, %s26
      %s29 = sphi 0, %s27
      %s30 = sphi 0, %s28
      %s40 = sphi 0, %s42
      %s43 = sphi 0, %s40
      %s44 = sphi 0, %s43
      %s60 = sphi 0, %s44
      %s64 = sphi 0, %s64
      %s66 = sphi 0, %s64
      %s67 = sphi 0, %s66
      %s81 = sphi 0, %s67
      %s85 = sphi 0, %s85
      %s87 = sphi 0, %s85
      %s88 = sphi 0, %s87
      %s102 = sphi 0, %s88
      %s108 = sphi 0, %s110
      %s111 = sphi 0, %s108
      %s112 = sphi 0, %s111
      %s128 = sphi 0, %s112
      %s134 = sphi 0, %s136
      %s137 = sphi 0, %s134
      %s138 = sphi 0, %s137
      %s154 = sphi 0, %s138
      %s162 = sphi 0, %s164
      %s165 = sphi 0, %s162
      %s166 = sphi 0, %s165
      %s182 = sphi 0, %s166
    $region4: #{tpu_custom_call.1} parent=1 // loop_header_branch
      %21 = sbr.rel (%p19) target = $region8
    $region5: #{tpu_custom_call.1} parent=1 // loop_body
      %s23 = ssub.s32 %s18, 1
      %s24 = ssub.s32 %s18, 2
      %s31 = sadd.s32 1, %s26
      %p32 = scmp.ge.s32.totalorder %s31, 1
      %s33 = scalar_select %p32, 0, %s31
      %s34 = sadd.s32 1, %s25
      %s35 = scalar_select %p32, %s34, %s25
      %p36 = scmp.ge.s32.totalorder %s35, 2
      %s37 = scalar_select %p36, 0, %s35
      %s38 = ssub.s32 %s25, %s37
      %p39 = scmp.eq.s32.totalorder %s38, 0
      %s41 = sadd.s32 %s40, 1
      %s42 = scalar_select %p39, %s40, %s41
      %p45 = pneg %p39
      %p46 = scmp.eq.s32.totalorder %s18, 1
      %p47 = por %p45, %p46
      %p48 = scmp.ne.s32.totalorder %s40, %s43
      %p49 = scmp.eq.s32.totalorder %s18, 0
      %p50 = por %p48, %p49
      %p51 = scmp.ne.s32.totalorder %s40, %s43
      %p52 = scmp.eq.s32.totalorder %s23, 1
      %p53 = por %p51, %p52
      %p54 = scmp.ne.s32.totalorder %s43, %s44
      %p55 = scmp.eq.s32.totalorder %s23, 0
      %p56 = por %p54, %p55
      %p57 = scmp.ne.s32.totalorder %s43, %s44
      %p58 = scmp.eq.s32.totalorder %s24, 1
      %p59 = por %p57, %p58
      %p61 = scmp.ne.s32.totalorder %s44, %s60
      %p62 = scmp.eq.s32.totalorder %s24, 0
      %p63 = por %p61, %p62
      %s65 = sadd.s32 %s64, 1
      %p68 = scmp.eq.s32.totalorder %s18, 1
      %p69 = scmp.ne.s32.totalorder %s64, %s66
      %p70 = scmp.eq.s32.totalorder %s18, 0
      %p71 = por %p69, %p70
      %p72 = scmp.ne.s32.totalorder %s64, %s66
      %p73 = scmp.eq.s32.totalorder %s23, 1
      %p74 = por %p72, %p73
      %p75 = scmp.ne.s32.totalorder %s66, %s67
      %p76 = scmp.eq.s32.totalorder %s23, 0
      %p77 = por %p75, %p76
      %p78 = scmp.ne.s32.totalorder %s66, %s67
      %p79 = scmp.eq.s32.totalorder %s24, 1
      %p80 = por %p78, %p79
      %p82 = scmp.ne.s32.totalorder %s67, %s81
      %p83 = scmp.eq.s32.totalorder %s24, 0
      %p84 = por %p82, %p83
      %s86 = sadd.s32 %s85, 1
      %p89 = scmp.eq.s32.totalorder %s18, 1
      %p90 = scmp.ne.s32.totalorder %s85, %s87
      %p91 = scmp.eq.s32.totalorder %s18, 0
      %p92 = por %p90, %p91
      %p93 = scmp.ne.s32.totalorder %s85, %s87
      %p94 = scmp.eq.s32.totalorder %s23, 1
      %p95 = por %p93, %p94
      %p96 = scmp.ne.s32.totalorder %s87, %s88
      %p97 = scmp.eq.s32.totalorder %s23, 0
      %p98 = por %p96, %p97
      %p99 = scmp.ne.s32.totalorder %s87, %s88
      %p100 = scmp.eq.s32.totalorder %s24, 1
      %p101 = por %p99, %p100
      %p103 = scmp.ne.s32.totalorder %s88, %s102
      %p104 = scmp.eq.s32.totalorder %s24, 0
      %p105 = por %p103, %p104
      %s106 = ssub.s32 %s26, %s33
      %p107 = scmp.eq.s32.totalorder %s106, 0
      %s109 = sadd.s32 %s108, 1
      %s110 = scalar_select %p107, %s108, %s109
      %p113 = pneg %p107
      %p114 = scmp.eq.s32.totalorder %s18, 1
      %p115 = por %p113, %p114
      %p116 = scmp.ne.s32.totalorder %s108, %s111
      %p117 = scmp.eq.s32.totalorder %s18, 0
      %p118 = por %p116, %p117
      %p119 = scmp.ne.s32.totalorder %s108, %s111
      %p120 = scmp.eq.s32.totalorder %s23, 1
      %p121 = por %p119, %p120
      %p122 = scmp.ne.s32.totalorder %s111, %s112
      %p123 = scmp.eq.s32.totalorder %s23, 0
      %p124 = por %p122, %p123
      %p125 = scmp.ne.s32.totalorder %s111, %s112
      %p126 = scmp.eq.s32.totalorder %s24, 1
      %p127 = por %p125, %p126
      %p129 = scmp.ne.s32.totalorder %s112, %s128
      %p130 = scmp.eq.s32.totalorder %s24, 0
      %p131 = por %p129, %p130
      %s132 = ssub.s32 %s26, %s33
      %p133 = scmp.eq.s32.totalorder %s132, 0
      %s135 = sadd.s32 %s134, 1
      %s136 = scalar_select %p133, %s134, %s135
      %p139 = pneg %p133
      %p140 = scmp.eq.s32.totalorder %s18, 1
      %p141 = por %p139, %p140
      %p142 = scmp.ne.s32.totalorder %s134, %s137
      %p143 = scmp.eq.s32.totalorder %s18, 0
      %p144 = por %p142, %p143
      %p145 = scmp.ne.s32.totalorder %s134, %s137
      %p146 = scmp.eq.s32.totalorder %s23, 1
      %p147 = por %p145, %p146
      %p148 = scmp.ne.s32.totalorder %s137, %s138
      %p149 = scmp.eq.s32.totalorder %s23, 0
      %p150 = por %p148, %p149
      %p151 = scmp.ne.s32.totalorder %s137, %s138
      %p152 = scmp.eq.s32.totalorder %s24, 1
      %p153 = por %p151, %p152
      %p155 = scmp.ne.s32.totalorder %s138, %s154
      %p156 = scmp.eq.s32.totalorder %s24, 0
      %p157 = por %p155, %p156
      %s158 = ssub.s32 %s25, %s37
      %s159 = ssub.s32 %s26, %s33
      %s160 = sor.u32 %s158, %s159
      %p161 = scmp.eq.s32.totalorder %s160, 0
      %s163 = sadd.s32 %s162, 1
      %s164 = scalar_select %p161, %s162, %s163
      %p167 = pneg %p161
      %p168 = scmp.eq.s32.totalorder %s18, 1
      %p169 = por %p167, %p168
      %p170 = scmp.ne.s32.totalorder %s162, %s165
      %p171 = scmp.eq.s32.totalorder %s18, 0
      %p172 = por %p170, %p171
      %p173 = scmp.ne.s32.totalorder %s162, %s165
      %p174 = scmp.eq.s32.totalorder %s23, 1
      %p175 = por %p173, %p174
      %p176 = scmp.ne.s32.totalorder %s165, %s166
      %p177 = scmp.eq.s32.totalorder %s23, 0
      %p178 = por %p176, %p177
      %p179 = scmp.ne.s32.totalorder %s165, %s166
      %p180 = scmp.eq.s32.totalorder %s24, 1
      %p181 = por %p179, %p180
      %p183 = scmp.ne.s32.totalorder %s166, %s182
      %p184 = scmp.eq.s32.totalorder %s24, 0
      %p185 = por %p183, %p184
      %p186 = scmp.le.s32.totalorder 1, %s18
      %p187 = scmp.lt.s32.totalorder %s18, 3
      %p188 = pnand %p186, %p187
      %p189 = pneg %p188
      // Predicated region
      $region9: #{tpu_custom_call.1} parent=5 // pred_check
        _
      $region10: #{tpu_custom_call.1} parent=5 // pred_check_branch
        %191 = sbr.rel (%p188) target = $region12
      $region11: #{tpu_custom_call.1} parent=5 // pred_region
        %s192 = ssub.s32 %s18, 1
        // Predicated region
        $region13: #{tpu_custom_call.1} parent=11 // pred_check
          %p193 = pneg %p77
        $region14: #{tpu_custom_call.1} parent=11 // pred_check_branch
          %195 = sbr.rel (%p193) target = $region16
        $region15: #{tpu_custom_call.1} parent=11 // pred_region
          _
        $region16: #{tpu_custom_call.1} parent=11 // pred_fallthru
          _
        // Predicated region
        $region17: #{tpu_custom_call.1} parent=11 // pred_check
          %p196 = pneg %p98
        $region18: #{tpu_custom_call.1} parent=11 // pred_check_branch
          %198 = sbr.rel (%p196) target = $region20
        $region19: #{tpu_custom_call.1} parent=11 // pred_region
          _
        $region20: #{tpu_custom_call.1} parent=11 // pred_fallthru
          _
        // Predicated region
        $region21: #{tpu_custom_call.1} parent=11 // pred_check
          %p199 = pneg %p124
        $region22: #{tpu_custom_call.1} parent=11 // pred_check_branch
          %201 = sbr.rel (%p199) target = $region24
        $region23: #{tpu_custom_call.1} parent=11 // pred_region
          %s203 = ssub.s32 256, 256
          %204 = vsyncadd [#allocation6], %s203
          %s205 = smul.addr %s28, 64
          %s206 = scalar_lea.hbm %s3, %s205
          %s207 = sshll.u32 [#allocation5], 4
          %s208 = int_to_ptr.vmem [resolvable:$true] %s207
          %213 = dma.hbm_to_vmem [thread:$0]  %s206, 256, %s208, [#allocation6], 64, 64, 4
        $region24: #{tpu_custom_call.1} parent=11 // pred_fallthru
          _
        // Predicated region
        $region25: #{tpu_custom_call.1} parent=11 // pred_check
          %p214 = pneg %p150
        $region26: #{tpu_custom_call.1} parent=11 // pred_check_branch
          %216 = sbr.rel (%p214) target = $region28
        $region27: #{tpu_custom_call.1} parent=11 // pred_region
          %p217 = scmp.lt.s32.totalorder %s28, 0
          %s218 = scalar_select %p217, %s28, 0
          %s219 = scalar_lea.vmem %s4, %s218
        $region28: #{tpu_custom_call.1} parent=11 // pred_fallthru
          _
      $region12: #{tpu_custom_call.1} parent=5 // pred_fallthru
        _
      %p220 = scmp.lt.s32.totalorder %s18, 2
      // Predicated region
      $region29: #{tpu_custom_call.1} parent=5 // pred_check
        %p221 = pneg %p220
      $region30: #{tpu_custom_call.1} parent=5 // pred_check_branch
        %223 = sbr.rel (%p221) target = $region32
      $region31: #{tpu_custom_call.1} parent=5 // pred_region
        // Predicated region
        $region33: #{tpu_custom_call.1} parent=31 // pred_check
          %p224 = pneg %p50
        $region34: #{tpu_custom_call.1} parent=31 // pred_check_branch
          %226 = sbr.rel (%p224) target = $region36
        $region35: #{tpu_custom_call.1} parent=31 // pred_region
          %s227 = sand.u32 %s40, 1
          %s228 = scalar_lea.sflag [#allocation3], %s227
          %s229 = sand.u32 %s40, 1
          %s230 = smul.addr %s229, 8
          %s231 = scalar_lea.vmem [#allocation2], %s230
          %s233 = ssub.s32 128, 128
          %234 = vsyncadd %s228, %s233
          %s235 = smul.addr %s25, 128
          %s236 = scalar_lea.hbm %s0, %s235
          %s238 = sshll.u32 %s231, 4
          %s239 = int_to_ptr.vmem [resolvable:$true] %s238
          %241 = dma.hbm_to_vmem [thread:$0]  %s236, 128, %s239, %s228
        $region36: #{tpu_custom_call.1} parent=31 // pred_fallthru
          _
      $region32: #{tpu_custom_call.1} parent=5 // pred_fallthru
        _
      %p242 = scmp.le.s32.totalorder 1, %s18
      %p243 = scmp.lt.s32.totalorder %s18, 3
      %p244 = pnand %p242, %p243
      %p245 = pneg %p244
      // Predicated region
      $region37: #{tpu_custom_call.1} parent=5 // pred_check
        _
      $region38: #{tpu_custom_call.1} parent=5 // pred_check_branch
        %247 = sbr.rel (%p244) target = $region40
      $region39: #{tpu_custom_call.1} parent=5 // pred_region
        %s248 = ssub.s32 %s18, 1
        %s249 = sand.u32 %s43, 1
        %s250 = scalar_lea.sflag [#allocation3], %s249
        %s251 = sand.u32 %s43, 1
        %s252 = smul.addr %s251, 8
        %s253 = scalar_lea.vmem [#allocation2], %s252
        // Predicated region
        $region41: #{tpu_custom_call.1} parent=39 // pred_check
          %p254 = pneg %p56
        $region42: #{tpu_custom_call.1} parent=39 // pred_check_branch
          %256 = sbr.rel (%p254) target = $region44
        $region43: #{tpu_custom_call.1} parent=39 // pred_region
          %257 = dma.done %s250, 128
        $region44: #{tpu_custom_call.1} parent=39 // pred_fallthru
          _
        // Predicated region
        $region45: #{tpu_custom_call.1} parent=39 // pred_check
          %p258 = pneg %p124
        $region46: #{tpu_custom_call.1} parent=39 // pred_check_branch
          %260 = sbr.rel (%p258) target = $region48
        $region47: #{tpu_custom_call.1} parent=39 // pred_region
          %261 = dma.done [#allocation6], 256
        $region48: #{tpu_custom_call.1} parent=39 // pred_fallthru
          _
        %s262 = sand.u32 %s43, 1
        %s263 = scalar_lea.sflag [#allocation3], %s262
        %s264 = sand.u32 %s43, 1
        %s265 = smul.addr %s264, 8
        %s266 = scalar_lea.vmem [#allocation2], %s265
        %p267 = pneg %p56
        %p268 = pneg %p53
        %p269 = pneg %p77
        %p270 = pneg %p74
        %p271 = pneg %p98
        %p272 = pneg %p95
        %p273 = pneg %p124
        %p274 = pneg %p121
        %p275 = scmp.lt.s32.totalorder %s28, 0
        %s276 = scalar_select %p275, %s28, 0
        %s277 = scalar_lea.vmem %s4, %s276
        %p278 = pneg %p150
        %p279 = pneg %p147
        %p280 = pneg %p178
        %p281 = pneg %p175
        %s282 = sand.u32 %s165, 1
        %s283 = scalar_lea.sflag [#allocation4], %s282
        %s284 = sand.u32 %s165, 1
        %s285 = smul.addr %s284, 8
        %s286 = scalar_lea.vmem [#allocation7], %s285
        %p287 = scmp.lt.s32.totalorder %s28, 0
        %s288 = scalar_select %p287, %s28, 0
        %s289 = scalar_lea.vmem %s4, %s288
        %v291 = vld [vmem:[%s253] sm:$0xff]
        %vm292 = vcmask 261120
        %v293 = vsel %vm292, %v291, 0.0
        %294 = vadd.xlane.f32.xlu0 %v293
        %v295 = vpop.xlane.xlu0 %294
        %v296 = vmul.f32 %v291, %v291
        %v297 = vsel %vm292, %v296, 0.0
        %298 = vadd.xlane.f32.xlu0 %v297
        %v299 = vpop.xlane.xlu0 %298
        %v300 = vmul.f32 %v295, 0.03125
        %v301 = vmul.f32 %v299, 0.03125
        %v302 = vmul.f32 %v300, %v300
        %v303 = vsub.f32 %v301, %v302
        %v304 = vmax.f32 %v303, 0.0
        %v305 = vadd.f32 %v304, 1e-05
        %v306 = vrsqrt.pop %v305
        %v307 = vsub.f32 %v291, %v300
        %v308 = vmul.f32 %v307, %v306
        %v309 = vld [vmem:[%s1] sm:$0x1]
        %v311 = vlaneseq
        %v312 = vshrl.u32 %v311, 7
        %v313 = vsub.s32 0, %v312
        %v314 = vrot.slane %v309, %v313
        %v316 = vmul.f32 %v308, %v314
        %v317 = vld [vmem:[%s2] sm:$0x1]
        %v319 = vlaneseq
        %v320 = vshrl.u32 %v319, 7
        %v321 = vsub.s32 0, %v320
        %v322 = vrot.slane %v317, %v321
        %v324 = vadd.f32 %v316, %v322
        %v325 = vpack.c.bf16 %v324, %v324
        %v326 = vld [vmem:[#allocation5] sm:$0xf]
        %v327 = vld [vmem:[#allocation5 + $0x4] sm:$0xf]
        %v328 = vld [vmem:[#allocation5 + $0x8] sm:$0xf]
        %v329 = vld [vmem:[#allocation5 + $0xc] sm:$0xf]
        %v330 = vld [vmem:[%s289] sm:$0x1]
        %v332 = vlaneseq
        %v333 = vshrl.u32 %v332, 7
        %v334 = vsub.s32 0, %v333
        %v335 = vrot.slane %v330, %v334
        %v341 = vunpack.c.l.b16 %v326
        %v342 = vunpack.c.l.b16 %v327
        %v343 = vunpack.c.l.b16 %v328
        %v344 = vunpack.c.l.b16 %v329
        %v345 = vpack.c.b16 %v342, %v341
        %v346 = vpack.c.b16 %v344, %v343
        %v350 = vsel %vm292, %v325, 0
        %352 = vmatprep.subr.bf16.mxu0 0
        %353 = vmatpush1.bf16.msra.mxu0 %v345
        %354 = vmatprep.subr.bf16.mxu0 0
        %355 = vmatpush1.bf16.msra.mxu0 %v346
        %356 = vmatprep.subr.bf16.mxu0 0
        %357 = vmatpush1.bf16.msra.mxu0 0
        %358 = vmatprep.subr.bf16.mxu0 0
        %359 = vmatpush1.bf16.msra.mxu0 0
        %360 = vmatprep.subr.bf16.mxu0 0
        %361 = vmatpush1.bf16.msra.mxu0 0
        %362 = vmatprep.subr.bf16.mxu0 0
        %363 = vmatpush1.bf16.msra.mxu0 0
        %364 = vmatprep.subr.bf16.mxu0 0
        %365 = vmatpush1.bf16.msra.mxu0 0
        %366 = vmatprep.subr.bf16.mxu0 0
        %367 = vmatpush1.bf16.msra.mxu0 0
        %368 = vmatprep.subr.bf16.mxu0 0
        %369 = vmatpush1.bf16.msra.mxu0 0
        %370 = vmatprep.subr.bf16.mxu0 0
        %371 = vmatpush1.bf16.msra.mxu0 0
        %372 = vmatprep.subr.bf16.mxu0 0
        %373 = vmatpush1.bf16.msra.mxu0 0
        %374 = vmatprep.subr.bf16.mxu0 0
        %375 = vmatpush1.bf16.msra.mxu0 0
        %376 = vmatprep.subr.bf16.mxu0 0
        %377 = vmatpush1.bf16.msra.mxu0 0
        %378 = vmatprep.subr.bf16.mxu0 0
        %379 = vmatpush1.bf16.msra.mxu0 0
        %380 = vmatprep.subr.bf16.mxu0 0
        %381 = vmatpush1.bf16.msra.mxu0 0
        %382 = vmatprep.subr.bf16.mxu0 0
        %383 = vmatpush1.bf16.msra.mxu0 0
        %384 = vmatprep.mubr.bf16.mxu0 0
        %385 = vmatmul.mubr.bf16.gmra.mrb[0].mxu0 %v350
        %v386 = vpop.f32.mrb[0].mxu0
        %v387 = vadd.f32 %v335, %v386
        %v388 = vpop.f32.mrb[0].mxu0
        %v389 = vpop.f32.mrb[0].mxu0
        %v390 = vpop.f32.mrb[0].mxu0
        %391 = vdwg.mxu0
        %392 = vst.msk [vmem:[%s286] sm:$0xff] %vm292, %v387
        %s393 = sand.u32 %s165, 1
        %s394 = scalar_lea.sflag [#allocation4], %s393
        %s395 = sand.u32 %s165, 1
        %s396 = smul.addr %s395, 8
        %s397 = scalar_lea.vmem [#allocation7], %s396
        // Predicated region
        $region49: #{tpu_custom_call.1} parent=39 // pred_check
          %p398 = pneg %p175
        $region50: #{tpu_custom_call.1} parent=39 // pred_check_branch
          %400 = sbr.rel (%p398) target = $region52
        $region51: #{tpu_custom_call.1} parent=39 // pred_region
          %s402 = ssub.s32 128, 128
          %403 = vsyncadd %s394, %s402
          %s404 = sadd.s32 %s28, %s27
          %s405 = smul.addr %s404, 128
          %s406 = scalar_lea.hbm %s5, %s405
          %s408 = sshll.u32 %s397, 4
          %s409 = int_to_ptr.vmem [resolvable:$true] %s408
          %411 = dma.vmem_to_hbm [thread:$0]  %s409, 128, %s406, %s394
        $region52: #{tpu_custom_call.1} parent=39 // pred_fallthru
          _
      $region40: #{tpu_custom_call.1} parent=5 // pred_fallthru
        _
      %p412 = scmp.le.s32.totalorder 2, %s18
      // Predicated region
      $region53: #{tpu_custom_call.1} parent=5 // pred_check
        %p413 = pneg %p412
      $region54: #{tpu_custom_call.1} parent=5 // pred_check_branch
        %415 = sbr.rel (%p413) target = $region56
      $region55: #{tpu_custom_call.1} parent=5 // pred_region
        %s416 = ssub.s32 %s18, 2
        // Predicated region
        $region57: #{tpu_custom_call.1} parent=55 // pred_check
          %p417 = pneg %p181
        $region58: #{tpu_custom_call.1} parent=55 // pred_check_branch
          %419 = sbr.rel (%p417) target = $region60
        $region59: #{tpu_custom_call.1} parent=55 // pred_region
          %s420 = sand.u32 %s166, 1
          %s421 = scalar_lea.sflag [#allocation4], %s420
          %s422 = sand.u32 %s166, 1
          %s423 = smul.addr %s422, 8
          %s424 = scalar_lea.vmem [#allocation7], %s423
          %425 = dma.done %s421, 128
        $region60: #{tpu_custom_call.1} parent=55 // pred_fallthru
          _
      $region56: #{tpu_custom_call.1} parent=5 // pred_fallthru
        _
    $region6: #{tpu_custom_call.1} parent=1 // loop_footer
      %s22 = sadd.s32 1, %s18
    $region7: #{tpu_custom_call.1} parent=1 // loop_footer_branch
      %17 = sbr.rel target = $region3
    $region8: #{tpu_custom_call.1} parent=1 // loop_exit
      _
    %426 = vsyncpa [#allocation3], 1
    %s427 = scalar_lea.sflag [#allocation3], 1
    %428 = vsyncpa %s427, 1
    %429 = vsyncpa [#allocation6], 1
    %430 = vsyncpa [#allocation4], 1
    %s431 = scalar_lea.sflag [#allocation4], 1
    %432 = vsyncpa %s431, 1

// kernel: tpu_custom_call.1
$region0: #{tpu_custom_call.1}
  #allocation0 [shape = 'u32[]', space=smem, size = 0x4, offset = 0x4, fixed_abs, tag = 'smem constant byte address 0x4 - core index']
  #allocation1 [shape = 'u32[144,128]{1,0:T(1,128)}', space=vmem, size = 0x12000, scoped, tag = 'internal scratch']
  %s0 = inlined_call_operand.hbm [shape: f32[16,32], index: 0, kind: input, shape index: {}]
  %s1 = inlined_call_operand.vmem [shape: f32[1,32], index: 1, kind: input, shape index: {}]
  %s2 = inlined_call_operand.vmem [shape: f32[1,32], index: 2, kind: input, shape index: {}]
  %s3 = inlined_call_operand.hbm [shape: bf16[32,32], index: 3, kind: input, shape index: {}]
  %s4 = inlined_call_operand.vmem [shape: f32[1,32], index: 4, kind: input, shape index: {}]
  %s5 = inlined_call_operand.hbm [shape: f32[16,32], index: 5, kind: output, shape index: {}]
  %s6 = sld [smem:[#allocation0]]
  $region61: #{tpu_custom_call.1} parent=0
    _
  %s8 = ssub.s32 1, %s6
  %s9 = scalar_select 0, %s8, %s6
  $region1: #{tpu_custom_call.1} parent=0
    #allocation2 [shape = 'u8[8192]{0}', space=vmem, size = 0x2000, scoped, tag = 'input window, operand 0']
    #allocation3 [shape = 's32[2]{0}', space=sflag, size = 0x8, scoped, tag = 'scoped memory for tpu_custom_call.1']
    #allocation4 [shape = 's32[2]{0}', space=sflag, size = 0x8, scoped, tag = 'scoped memory for tpu_custom_call.1']
    #allocation5 [shape = 'u8[8192]{0}', space=vmem, size = 0x2000, scoped, tag = 'input window, operand 3, single buffered']
    #allocation6 [shape = 's32[1]{0}', space=sflag, size = 0x4, scoped, tag = 'scoped memory for tpu_custom_call.1']
    #allocation7 [shape = 'u8[8192]{0}', space=vmem, size = 0x2000, scoped, tag = 'output window, operand 0']
    %10 = vsyncpa [#allocation3], 0
    %s11 = scalar_lea.sflag [#allocation3], 1
    %12 = vsyncpa %s11, 0
    %13 = vsyncpa [#allocation6], 0
    %14 = vsyncpa [#allocation4], 0
    %s15 = scalar_lea.sflag [#allocation4], 1
    %16 = vsyncpa %s15, 0
    loop: start=0, step=1, limit=4
    $region2: #{tpu_custom_call.1} parent=1 // loop_pre_header
      _
    $region3: #{tpu_custom_call.1} parent=1 // loop_header
      %s18 = sphi 0, %s22
      %p19 = scmp.ge.s32.totalorder %s18, 4
      %s25 = sphi 0, %s37
      %s26 = sphi 0, %s33
      %s27 = sphi 0, %s25
      %s28 = sphi 0, %s26
      %s29 = sphi 0, %s27
      %s30 = sphi 0, %s28
      %s40 = sphi 0, %s42
      %s43 = sphi 0, %s40
      %s44 = sphi 0, %s43
      %s60 = sphi 0, %s44
      %s64 = sphi 0, %s64
      %s66 = sphi 0, %s64
      %s67 = sphi 0, %s66
      %s81 = sphi 0, %s67
      %s85 = sphi 0, %s85
      %s87 = sphi 0, %s85
      %s88 = sphi 0, %s87
      %s102 = sphi 0, %s88
      %s108 = sphi 0, %s110
      %s111 = sphi 0, %s108
      %s112 = sphi 0, %s111
      %s128 = sphi 0, %s112
      %s134 = sphi 0, %s136
      %s137 = sphi 0, %s134
      %s138 = sphi 0, %s137
      %s154 = sphi 0, %s138
      %s162 = sphi 0, %s164
      %s165 = sphi 0, %s162
      %s166 = sphi 0, %s165
      %s182 = sphi 0, %s166
    $region4: #{tpu_custom_call.1} parent=1 // loop_header_branch
      %21 = sbr.rel (%p19) target = $region8
    $region5: #{tpu_custom_call.1} parent=1 // loop_body
      %s23 = ssub.s32 %s18, 1
      %s24 = ssub.s32 %s18, 2
      %s31 = sadd.s32 1, %s26
      %p32 = scmp.ge.s32.totalorder %s31, 1
      %s33 = scalar_select %p32, 0, %s31
      %s34 = sadd.s32 1, %s25
      %s35 = scalar_select %p32, %s34, %s25
      %p36 = scmp.ge.s32.totalorder %s35, 2
      %s37 = scalar_select %p36, 0, %s35
      %s38 = ssub.s32 %s25, %s37
      %p39 = scmp.eq.s32.totalorder %s38, 0
      %s41 = sadd.s32 %s40, 1
      %s42 = scalar_select %p39, %s40, %s41
      %p45 = pneg %p39
      %p46 = scmp.eq.s32.totalorder %s18, 1
      %p47 = por %p45, %p46
      %p48 = scmp.ne.s32.totalorder %s40, %s43
      %p49 = scmp.eq.s32.totalorder %s18, 0
      %p50 = por %p48, %p49
      %p51 = scmp.ne.s32.totalorder %s40, %s43
      %p52 = scmp.eq.s32.totalorder %s23, 1
      %p53 = por %p51, %p52
      %p54 = scmp.ne.s32.totalorder %s43, %s44
      %p55 = scmp.eq.s32.totalorder %s23, 0
      %p56 = por %p54, %p55
      %p57 = scmp.ne.s32.totalorder %s43, %s44
      %p58 = scmp.eq.s32.totalorder %s24, 1
      %p59 = por %p57, %p58
      %p61 = scmp.ne.s32.totalorder %s44, %s60
      %p62 = scmp.eq.s32.totalorder %s24, 0
      %p63 = por %p61, %p62
      %s65 = sadd.s32 %s64, 1
      %p68 = scmp.eq.s32.totalorder %s18, 1
      %p69 = scmp.ne.s32.totalorder %s64, %s66
      %p70 = scmp.eq.s32.totalorder %s18, 0
      %p71 = por %p69, %p70
      %p72 = scmp.ne.s32.totalorder %s64, %s66
      %p73 = scmp.eq.s32.totalorder %s23, 1
      %p74 = por %p72, %p73
      %p75 = scmp.ne.s32.totalorder %s66, %s67
      %p76 = scmp.eq.s32.totalorder %s23, 0
      %p77 = por %p75, %p76
      %p78 = scmp.ne.s32.totalorder %s66, %s67
      %p79 = scmp.eq.s32.totalorder %s24, 1
      %p80 = por %p78, %p79
      %p82 = scmp.ne.s32.totalorder %s67, %s81
      %p83 = scmp.eq.s32.totalorder %s24, 0
      %p84 = por %p82, %p83
      %s86 = sadd.s32 %s85, 1
      %p89 = scmp.eq.s32.totalorder %s18, 1
      %p90 = scmp.ne.s32.totalorder %s85, %s87
      %p91 = scmp.eq.s32.totalorder %s18, 0
      %p92 = por %p90, %p91
      %p93 = scmp.ne.s32.totalorder %s85, %s87
      %p94 = scmp.eq.s32.totalorder %s23, 1
      %p95 = por %p93, %p94
      %p96 = scmp.ne.s32.totalorder %s87, %s88
      %p97 = scmp.eq.s32.totalorder %s23, 0
      %p98 = por %p96, %p97
      %p99 = scmp.ne.s32.totalorder %s87, %s88
      %p100 = scmp.eq.s32.totalorder %s24, 1
      %p101 = por %p99, %p100
      %p103 = scmp.ne.s32.totalorder %s88, %s102
      %p104 = scmp.eq.s32.totalorder %s24, 0
      %p105 = por %p103, %p104
      %s106 = ssub.s32 %s26, %s33
      %p107 = scmp.eq.s32.totalorder %s106, 0
      %s109 = sadd.s32 %s108, 1
      %s110 = scalar_select %p107, %s108, %s109
      %p113 = pneg %p107
      %p114 = scmp.eq.s32.totalorder %s18, 1
      %p115 = por %p113, %p114
      %p116 = scmp.ne.s32.totalorder %s108, %s111
      %p117 = scmp.eq.s32.totalorder %s18, 0
      %p118 = por %p116, %p117
      %p119 = scmp.ne.s32.totalorder %s108, %s111
      %p120 = scmp.eq.s32.totalorder %s23, 1
      %p121 = por %p119, %p120
      %p122 = scmp.ne.s32.totalorder %s111, %s112
      %p123 = scmp.eq.s32.totalorder %s23, 0
      %p124 = por %p122, %p123
      %p125 = scmp.ne.s32.totalorder %s111, %s112
      %p126 = scmp.eq.s32.totalorder %s24, 1
      %p127 = por %p125, %p126
      %p129 = scmp.ne.s32.totalorder %s112, %s128
      %p130 = scmp.eq.s32.totalorder %s24, 0
      %p131 = por %p129, %p130
      %s132 = ssub.s32 %s26, %s33
      %p133 = scmp.eq.s32.totalorder %s132, 0
      %s135 = sadd.s32 %s134, 1
      %s136 = scalar_select %p133, %s134, %s135
      %p139 = pneg %p133
      %p140 = scmp.eq.s32.totalorder %s18, 1
      %p141 = por %p139, %p140
      %p142 = scmp.ne.s32.totalorder %s134, %s137
      %p143 = scmp.eq.s32.totalorder %s18, 0
      %p144 = por %p142, %p143
      %p145 = scmp.ne.s32.totalorder %s134, %s137
      %p146 = scmp.eq.s32.totalorder %s23, 1
      %p147 = por %p145, %p146
      %p148 = scmp.ne.s32.totalorder %s137, %s138
      %p149 = scmp.eq.s32.totalorder %s23, 0
      %p150 = por %p148, %p149
      %p151 = scmp.ne.s32.totalorder %s137, %s138
      %p152 = scmp.eq.s32.totalorder %s24, 1
      %p153 = por %p151, %p152
      %p155 = scmp.ne.s32.totalorder %s138, %s154
      %p156 = scmp.eq.s32.totalorder %s24, 0
      %p157 = por %p155, %p156
      %s158 = ssub.s32 %s25, %s37
      %s159 = ssub.s32 %s26, %s33
      %s160 = sor.u32 %s158, %s159
      %p161 = scmp.eq.s32.totalorder %s160, 0
      %s163 = sadd.s32 %s162, 1
      %s164 = scalar_select %p161, %s162, %s163
      %p167 = pneg %p161
      %p168 = scmp.eq.s32.totalorder %s18, 1
      %p169 = por %p167, %p168
      %p170 = scmp.ne.s32.totalorder %s162, %s165
      %p171 = scmp.eq.s32.totalorder %s18, 0
      %p172 = por %p170, %p171
      %p173 = scmp.ne.s32.totalorder %s162, %s165
      %p174 = scmp.eq.s32.totalorder %s23, 1
      %p175 = por %p173, %p174
      %p176 = scmp.ne.s32.totalorder %s165, %s166
      %p177 = scmp.eq.s32.totalorder %s23, 0
      %p178 = por %p176, %p177
      %p179 = scmp.ne.s32.totalorder %s165, %s166
      %p180 = scmp.eq.s32.totalorder %s24, 1
      %p181 = por %p179, %p180
      %p183 = scmp.ne.s32.totalorder %s166, %s182
      %p184 = scmp.eq.s32.totalorder %s24, 0
      %p185 = por %p183, %p184
      %p186 = scmp.le.s32.totalorder 1, %s18
      %p187 = scmp.lt.s32.totalorder %s18, 3
      %p188 = pnand %p186, %p187
      %p189 = pneg %p188
      // Predicated region
      $region9: #{tpu_custom_call.1} parent=5 // pred_check
        _
      $region10: #{tpu_custom_call.1} parent=5 // pred_check_branch
        %191 = sbr.rel (%p188) target = $region12
      $region11: #{tpu_custom_call.1} parent=5 // pred_region
        %s192 = ssub.s32 %s18, 1
        // Predicated region
        $region13: #{tpu_custom_call.1} parent=11 // pred_check
          %p193 = pneg %p77
        $region14: #{tpu_custom_call.1} parent=11 // pred_check_branch
          %195 = sbr.rel (%p193) target = $region16
        $region15: #{tpu_custom_call.1} parent=11 // pred_region
          _
        $region16: #{tpu_custom_call.1} parent=11 // pred_fallthru
          _
        // Predicated region
        $region17: #{tpu_custom_call.1} parent=11 // pred_check
          %p196 = pneg %p98
        $region18: #{tpu_custom_call.1} parent=11 // pred_check_branch
          %198 = sbr.rel (%p196) target = $region20
        $region19: #{tpu_custom_call.1} parent=11 // pred_region
          _
        $region20: #{tpu_custom_call.1} parent=11 // pred_fallthru
          _
        // Predicated region
        $region21: #{tpu_custom_call.1} parent=11 // pred_check
          %p199 = pneg %p124
        $region22: #{tpu_custom_call.1} parent=11 // pred_check_branch
          %201 = sbr.rel (%p199) target = $region24
        $region23: #{tpu_custom_call.1} parent=11 // pred_region
          %s203 = ssub.s32 256, 256
          %204 = vsyncadd [#allocation6], %s203
          %s205 = smul.addr %s28, 64
          %s206 = scalar_lea.hbm %s3, %s205
          %s207 = sshll.u32 [#allocation5], 4
          %s208 = int_to_ptr.vmem [resolvable:$true] %s207
          %213 = dma.hbm_to_vmem [thread:$0]  %s206, 256, %s208, [#allocation6], 64, 64, 4
        $region24: #{tpu_custom_call.1} parent=11 // pred_fallthru
          _
        // Predicated region
        $region25: #{tpu_custom_call.1} parent=11 // pred_check
          %p214 = pneg %p150
        $region26: #{tpu_custom_call.1} parent=11 // pred_check_branch
          %216 = sbr.rel (%p214) target = $region28
        $region27: #{tpu_custom_call.1} parent=11 // pred_region
          %p217 = scmp.lt.s32.totalorder %s28, 0
          %s218 = scalar_select %p217, %s28, 0
          %s219 = scalar_lea.vmem %s4, %s218
        $region28: #{tpu_custom_call.1} parent=11 // pred_fallthru
          _
      $region12: #{tpu_custom_call.1} parent=5 // pred_fallthru
        _
      %p220 = scmp.lt.s32.totalorder %s18, 2
      // Predicated region
      $region29: #{tpu_custom_call.1} parent=5 // pred_check
        %p221 = pneg %p220
      $region30: #{tpu_custom_call.1} parent=5 // pred_check_branch
        %223 = sbr.rel (%p221) target = $region32
      $region31: #{tpu_custom_call.1} parent=5 // pred_region
        // Predicated region
        $region33: #{tpu_custom_call.1} parent=31 // pred_check
          %p224 = pneg %p50
        $region34: #{tpu_custom_call.1} parent=31 // pred_check_branch
          %226 = sbr.rel (%p224) target = $region36
        $region35: #{tpu_custom_call.1} parent=31 // pred_region
          %s227 = sand.u32 %s40, 1
          %s228 = scalar_lea.sflag [#allocation3], %s227
          %s229 = sand.u32 %s40, 1
          %s230 = smul.addr %s229, 8
          %s231 = scalar_lea.vmem [#allocation2], %s230
          %s233 = ssub.s32 128, 128
          %234 = vsyncadd %s228, %s233
          %s235 = smul.addr %s25, 128
          %s236 = scalar_lea.hbm %s0, %s235
          %s238 = sshll.u32 %s231, 4
          %s239 = int_to_ptr.vmem [resolvable:$true] %s238
          %241 = dma.hbm_to_vmem [thread:$0]  %s236, 128, %s239, %s228
        $region36: #{tpu_custom_call.1} parent=31 // pred_fallthru
          _
      $region32: #{tpu_custom_call.1} parent=5 // pred_fallthru
        _
      %p242 = scmp.le.s32.totalorder 1, %s18
      %p243 = scmp.lt.s32.totalorder %s18, 3
      %p244 = pnand %p242, %p243
      %p245 = pneg %p244
      // Predicated region
      $region37: #{tpu_custom_call.1} parent=5 // pred_check
        _
      $region38: #{tpu_custom_call.1} parent=5 // pred_check_branch
        %247 = sbr.rel (%p244) target = $region40
      $region39: #{tpu_custom_call.1} parent=5 // pred_region
        %s248 = ssub.s32 %s18, 1
        %s249 = sand.u32 %s43, 1
        %s250 = scalar_lea.sflag [#allocation3], %s249
        %s251 = sand.u32 %s43, 1
        %s252 = smul.addr %s251, 8
        %s253 = scalar_lea.vmem [#allocation2], %s252
        // Predicated region
        $region41: #{tpu_custom_call.1} parent=39 // pred_check
          %p254 = pneg %p56
        $region42: #{tpu_custom_call.1} parent=39 // pred_check_branch
          %256 = sbr.rel (%p254) target = $region44
        $region43: #{tpu_custom_call.1} parent=39 // pred_region
          %257 = dma.done %s250, 128
        $region44: #{tpu_custom_call.1} parent=39 // pred_fallthru
          _
        // Predicated region
        $region45: #{tpu_custom_call.1} parent=39 // pred_check
          %p258 = pneg %p124
        $region46: #{tpu_custom_call.1} parent=39 // pred_check_branch
          %260 = sbr.rel (%p258) target = $region48
        $region47: #{tpu_custom_call.1} parent=39 // pred_region
          %261 = dma.done [#allocation6], 256
        $region48: #{tpu_custom_call.1} parent=39 // pred_fallthru
          _
        %s262 = sand.u32 %s43, 1
        %s263 = scalar_lea.sflag [#allocation3], %s262
        %s264 = sand.u32 %s43, 1
        %s265 = smul.addr %s264, 8
        %s266 = scalar_lea.vmem [#allocation2], %s265
        %p267 = pneg %p56
        %p268 = pneg %p53
        %p269 = pneg %p77
        %p270 = pneg %p74
        %p271 = pneg %p98
        %p272 = pneg %p95
        %p273 = pneg %p124
        %p274 = pneg %p121
        %p275 = scmp.lt.s32.totalorder %s28, 0
        %s276 = scalar_select %p275, %s28, 0
        %s277 = scalar_lea.vmem %s4, %s276
        %p278 = pneg %p150
        %p279 = pneg %p147
        %p280 = pneg %p178
        %p281 = pneg %p175
        %s282 = sand.u32 %s165, 1
        %s283 = scalar_lea.sflag [#allocation4], %s282
        %s284 = sand.u32 %s165, 1
        %s285 = smul.addr %s284, 8
        %s286 = scalar_lea.vmem [#allocation7], %s285
        %p287 = scmp.lt.s32.totalorder %s28, 0
        %s288 = scalar_select %p287, %s28, 0
        %s289 = scalar_lea.vmem %s4, %s288
        %v291 = vld [vmem:[%s253] sm:$0xff]
        %vm292 = vcmask 261120
        %v293 = vsel %vm292, %v291, 0.0
        %294 = vadd.xlane.f32.xlu0 %v293
        %v295 = vpop.xlane.xlu0 %294
        %v296 = vmul.f32 %v291, %v291
        %v297 = vsel %vm292, %v296, 0.0
        %298 = vadd.xlane.f32.xlu0 %v297
        %v299 = vpop.xlane.xlu0 %298
        %v300 = vmul.f32 %v295, 0.03125
        %v301 = vmul.f32 %v299, 0.03125
        %v302 = vmul.f32 %v300, %v300
        %v303 = vsub.f32 %v301, %v302
        %v304 = vmax.f32 %v303, 0.0
        %v305 = vadd.f32 %v304, 1e-05
        %v306 = vrsqrt.pop %v305
        %v307 = vsub.f32 %v291, %v300
        %v308 = vmul.f32 %v307, %v306
        %v309 = vld [vmem:[%s1] sm:$0x1]
        %v311 = vlaneseq
        %v312 = vshrl.u32 %v311, 7
        %v313 = vsub.s32 0, %v312
        %v314 = vrot.slane %v309, %v313
        %v316 = vmul.f32 %v308, %v314
        %v317 = vld [vmem:[%s2] sm:$0x1]
        %v319 = vlaneseq
        %v320 = vshrl.u32 %v319, 7
        %v321 = vsub.s32 0, %v320
        %v322 = vrot.slane %v317, %v321
        %v324 = vadd.f32 %v316, %v322
        %v325 = vpack.c.bf16 %v324, %v324
        %v326 = vld [vmem:[#allocation5] sm:$0xf]
        %v327 = vld [vmem:[#allocation5 + $0x4] sm:$0xf]
        %v328 = vld [vmem:[#allocation5 + $0x8] sm:$0xf]
        %v329 = vld [vmem:[#allocation5 + $0xc] sm:$0xf]
        %v330 = vld [vmem:[%s289] sm:$0x1]
        %v332 = vlaneseq
        %v333 = vshrl.u32 %v332, 7
        %v334 = vsub.s32 0, %v333
        %v335 = vrot.slane %v330, %v334
        %v341 = vunpack.c.l.b16 %v326
        %v342 = vunpack.c.l.b16 %v327
        %v343 = vunpack.c.l.b16 %v328
        %v344 = vunpack.c.l.b16 %v329
        %v345 = vpack.c.b16 %v342, %v341
        %v346 = vpack.c.b16 %v344, %v343
        %v350 = vsel %vm292, %v325, 0
        %352 = vmatprep.subr.bf16.mxu0 0
        %353 = vmatpush1.bf16.msra.mxu0 %v345
        %354 = vmatprep.subr.bf16.mxu0 0
        %355 = vmatpush1.bf16.msra.mxu0 %v346
        %356 = vmatprep.subr.bf16.mxu0 0
        %357 = vmatpush1.bf16.msra.mxu0 0
        %358 = vmatprep.subr.bf16.mxu0 0
        %359 = vmatpush1.bf16.msra.mxu0 0
        %360 = vmatprep.subr.bf16.mxu0 0
        %361 = vmatpush1.bf16.msra.mxu0 0
        %362 = vmatprep.subr.bf16.mxu0 0
        %363 = vmatpush1.bf16.msra.mxu0 0
        %364 = vmatprep.subr.bf16.mxu0 0
        %365 = vmatpush1.bf16.msra.mxu0 0
        %366 = vmatprep.subr.bf16.mxu0 0
        %367 = vmatpush1.bf16.msra.mxu0 0
        %368 = vmatprep.subr.bf16.mxu0 0
        %369 = vmatpush1.bf16.msra.mxu0 0
        %370 = vmatprep.subr.bf16.mxu0 0
        %371 = vmatpush1.bf16.msra.mxu0 0
        %372 = vmatprep.subr.bf16.mxu0 0
        %373 = vmatpush1.bf16.msra.mxu0 0
        %374 = vmatprep.subr.bf16.mxu0 0
        %375 = vmatpush1.bf16.msra.mxu0 0
        %376 = vmatprep.subr.bf16.mxu0 0
        %377 = vmatpush1.bf16.msra.mxu0 0
        %378 = vmatprep.subr.bf16.mxu0 0
        %379 = vmatpush1.bf16.msra.mxu0 0
        %380 = vmatprep.subr.bf16.mxu0 0
        %381 = vmatpush1.bf16.msra.mxu0 0
        %382 = vmatprep.subr.bf16.mxu0 0
        %383 = vmatpush1.bf16.msra.mxu0 0
        %384 = vmatprep.mubr.bf16.mxu0 0
        %385 = vmatmul.mubr.bf16.gmra.mrb[0].mxu0 %v350
        %v386 = vpop.f32.mrb[0].mxu0
        %v387 = vadd.f32 %v335, %v386
        %v388 = vpop.f32.mrb[0].mxu0
        %v389 = vpop.f32.mrb[0].mxu0
        %v390 = vpop.f32.mrb[0].mxu0
        %391 = vdwg.mxu0
        %392 = vst.msk [vmem:[%s286] sm:$0xff] %vm292, %v387
        %s393 = sand.u32 %s165, 1
        %s394 = scalar_lea.sflag [#allocation4], %s393
        %s395 = sand.u32 %s165, 1
        %s396 = smul.addr %s395, 8
        %s397 = scalar_lea.vmem [#allocation7], %s396
        // Predicated region
        $region49: #{tpu_custom_call.1} parent=39 // pred_check
          %p398 = pneg %p175
        $region50: #{tpu_custom_call.1} parent=39 // pred_check_branch
          %400 = sbr.rel (%p398) target = $region52
        $region51: #{tpu_custom_call.1} parent=39 // pred_region
          %s402 = ssub.s32 128, 128
          %403 = vsyncadd %s394, %s402
          %s404 = sadd.s32 %s28, %s27
          %s405 = smul.addr %s404, 128
          %s406 = scalar_lea.hbm %s5, %s405
          %s408 = sshll.u32 %s397, 4
          %s409 = int_to_ptr.vmem [resolvable:$true] %s408
          %411 = dma.vmem_to_hbm [thread:$0]  %s409, 128, %s406, %s394
        $region52: #{tpu_custom_call.1} parent=39 // pred_fallthru
          _
      $region40: #{tpu_custom_call.1} parent=5 // pred_fallthru
        _
      %p412 = scmp.le.s32.totalorder 2, %s18
      // Predicated region
      $region53: #{tpu_custom_call.1} parent=5 // pred_check
        %p413 = pneg %p412
      $region54: #{tpu_custom_call.1} parent=5 // pred_check_branch
        %415 = sbr.rel (%p413) target = $region56
      $region55: #{tpu_custom_call.1} parent=5 // pred_region
        %s416 = ssub.s32 %s18, 2
        // Predicated region
        $region57: #{tpu_custom_call.1} parent=55 // pred_check
          %p417 = pneg %p181
        $region58: #{tpu_custom_call.1} parent=55 // pred_check_branch
          %419 = sbr.rel (%p417) target = $region60
        $region59: #{tpu_custom_call.1} parent=55 // pred_region
          %s420 = sand.u32 %s166, 1
          %s421 = scalar_lea.sflag [#allocation4], %s420
          %s422 = sand.u32 %s166, 1
          %s423 = smul.addr %s422, 8
          %s424 = scalar_lea.vmem [#allocation7], %s423
          %425 = dma.done %s421, 128
        $region60: #{tpu_custom_call.1} parent=55 // pred_fallthru
          _
      $region56: #{tpu_custom_call.1} parent=5 // pred_fallthru
        _
    $region6: #{tpu_custom_call.1} parent=1 // loop_footer
      %s22 = sadd.s32 1, %s18
    $region7: #{tpu_custom_call.1} parent=1 // loop_footer_branch
      %17 = sbr.rel target = $region3
    $region8: #{tpu_custom_call.1} parent=1 // loop_exit
      _
    %426 = vsyncpa [#allocation3], 1
    %s427 = scalar_lea.sflag [#allocation3], 1
    %428 = vsyncpa %s427, 1
    %429 = vsyncpa [#allocation6], 1
    %430 = vsyncpa [#allocation4], 1
    %s431 = scalar_lea.sflag [#allocation4], 1
    %432 = vsyncpa %s431, 1

</llo_original>
